<compile_context>
chip_gen: v7x
topology: tpu7x:2x2x1
jax: 0.10.0
libtpu: 0.0.40
codegen_flags: <defaults>
</compile_context>

<pallas_src>
import jax
import jax.numpy as jnp
from jax import lax
from jax.experimental import pallas as pl
from jax.experimental.pallas import tpu as pltpu

_WIDTHS = (1024, 512, 256, 128)          # lane-dense slab widths (multiples of 128)
_INPUT_VMEM_BUDGET = 16 * 1024 * 1024    # double-buffered input blocks budget
_MAX_BLOCK_ELEMS = 2 * 1024 * 1024       # <=2048 rows @ width 1024 (v7x VMEM guidance)
_VMEM_LIMIT = 28 * 1024 * 1024           # explicit scoped-VMEM limit (covers v5e default)
_MIN_ROWS_FOR_SHARDING = 64              # below this: one full-extent block, one shard


def _round_up(x, m):
    return ((x + m - 1) // m) * m


def _round_down(x, m):
    return (x // m) * m


def _bce_elem(x, t):
    """Per-element nn.BCELoss()(sigmoid(x), t): log terms clamped at -100."""
    p = 1.0 / (1.0 + jnp.exp(-x))                    # sigmoid in f32 (exact semantics)
    neg_log_p = jnp.minimum(-jnp.log(p), 100.0)      # -log(p)   clamped (== max(log,-100))
    neg_log_1mp = jnp.minimum(-jnp.log(1.0 - p), 100.0)  # -log(1-p) clamped
    return t * (neg_log_p - neg_log_1mp) + neg_log_1mp   # = t*nlp + (1-t)*nl1p


def _make_kernel(*, block_rows, width, acc_rows, rows, steps, need_mask):
    group = block_rows // acc_rows

    def kernel(x_ref, t_ref, o_ref):
        i = pl.program_id(1)

        @pl.when(i == 0)
        def _():
            o_ref[...] = jnp.zeros_like(o_ref)

        # Native-dtype blocks; cast per tile (keeps HBM traffic at native width).
        x = x_ref[...].astype(jnp.float32)
        t = t_ref[...].astype(jnp.float32)
        loss = _bce_elem(x, t)

        if need_mask:
            # Global block index -> number of valid rows in this block; garbage
            # rows of the edge / clamped-duplicate blocks contribute 0.
            g = pl.program_id(0) * steps + i
            valid = rows - g * block_rows
            row_ids = lax.broadcasted_iota(jnp.int32, (block_rows, width), 0)
            loss = jnp.where(row_ids < valid, loss, 0.0)

        # Reduce to an 8-vreg accumulator with cross-vreg VALU adds (no XLU),
        # accumulated directly into the resident output block.
        if group > 1:
            part = loss.reshape(group, acc_rows, width).sum(axis=0)
        else:
            part = loss
        o_ref[...] += part[None]

    return kernel


def _stream_dtype(a):
    """Keep dtypes the kernel can stream natively; normalise only exotic ones."""
    if a.dtype in (jnp.float32, jnp.bfloat16, jnp.int8, jnp.uint8):
        return a
    if a.dtype == jnp.bool_:
        return a.astype(jnp.int8)
    return a.astype(jnp.float32)


def bce_loss(inputs, targets):
    """Pallas TPU equivalent of nn.BCELoss()(torch.sigmoid(inputs), targets.float())."""
    assert inputs.shape == targets.shape, (inputs.shape, targets.shape)
    total = int(inputs.size)
    assert total > 0

    # No wrapper-side f32 upcast (that would add a full HBM pass & double bytes).
    x_flat = _stream_dtype(inputs).reshape(-1)
    t_flat = _stream_dtype(targets).reshape(-1)

    # Ragged tail (< 128 elements) evaluated in plain JAX; everything that is a
    # multiple of 128 streams through the kernel via zero-copy reshapes.
    rem = total % 128
    main = total - rem
    tail_sum = jnp.float32(0.0)
    if rem:
        # TODO(synk): a fully zero-copy ragged path needs memory_space=pl.ANY +
        # manual DMA; the prefix slice below may copy the `main` elements.
        xt = x_flat[main:].astype(jnp.float32)
        tt = t_flat[main:].astype(jnp.float32)
        tail_sum = jnp.sum(_bce_elem(xt, tt), dtype=jnp.float32)
        x_flat = x_flat[:main]
        t_flat = t_flat[:main]
    if main == 0:
        return tail_sum / jnp.float32(total)

    # Lane-dense slab: widest multiple-of-128 width dividing `main` -> free reshape.
    width = next(w for w in _WIDTHS if main % w == 0)
    rows = main // width
    x2d = x_flat.reshape(rows, width)
    t2d = t_flat.reshape(rows, width)

    xb = x2d.dtype.itemsize
    tb = t2d.dtype.itemsize
    block_elems = min(_INPUT_VMEM_BUDGET // (2 * (xb + tb)), _MAX_BLOCK_ELEMS)
    max_block_rows = max(64, _round_down(block_elems // width, 64))

    if rows <= _MIN_ROWS_FOR_SHARDING:
        # Single full-extent block (satisfies the sublane-tile rule via the
        # "equal to the full dim" escape for every streamed dtype).
        shards, block_rows, acc_rows = 1, rows, rows
    else:
        shards = 2                        # one partial per TC on v7x; serial loop on v5e/v6e
        block_rows = min(max_block_rows, _round_up(pl.cdiv(rows, shards), 64))
        acc_rows = 8192 // width          # 8 vregs of accumulator (32 KiB)

    blocks = pl.cdiv(rows, block_rows)
    steps = pl.cdiv(blocks, shards)
    need_mask = shards * steps * block_rows != rows
    need_clamp = shards * steps != blocks

    if need_clamp:
        in_map = lambda c, i: (jnp.minimum(c * steps + i, blocks - 1), 0)
    else:
        in_map = lambda c, i: (c * steps + i, 0)

    kernel = _make_kernel(block_rows=block_rows, width=width, acc_rows=acc_rows,
                          rows=rows, steps=steps, need_mask=need_mask)

    partials = pl.pallas_call(
        kernel,
        out_shape=jax.ShapeDtypeStruct((shards, acc_rows, width), jnp.float32),
        grid_spec=pltpu.PrefetchScalarGridSpec(
            num_scalar_prefetch=0,
            grid=(shards, steps),
            in_specs=[
                pl.BlockSpec((block_rows, width), in_map),
                pl.BlockSpec((block_rows, width), in_map),
            ],
            out_specs=pl.BlockSpec((1, acc_rows, width), lambda c, i: (c, 0, 0)),
        ),
        compiler_params=pltpu.CompilerParams(
            dimension_semantics=("parallel", "arbitrary"),
            vmem_limit_bytes=_VMEM_LIMIT,
        ),
    )(x2d, t2d)

    return (jnp.sum(partials, dtype=jnp.float32) + tail_sum) / jnp.float32(total)


def _ref_bce(x, t):
    """Pure-JAX reference: nn.BCELoss()(sigmoid(x), t) with PyTorch's -100 clamp."""
    p = jax.nn.sigmoid(x)
    return -jnp.mean(t * jnp.maximum(jnp.log(p), -100.0)
                     + (1.0 - t) * jnp.maximum(jnp.log(1.0 - p), -100.0))


if __name__ == "__main__":
    key = jax.random.PRNGKey(0)
    k1, k2, k3, k4 = jax.random.split(key, 4)
    bce = jax.jit(bce_loss)

    # --- check 1: small segmentation-style logit map (NCHW), f32 in / f32 targets
    N, C, H, W = 2, 4, 16, 16
    logits = jax.random.normal(k1, (N, C, H, W), dtype=jnp.float32)
    targets = (jax.random.uniform(k2, (N, C, H, W)) > 0.5).astype(jnp.float32)
    loss = bce(logits, targets)
    jax.block_until_ready(loss)
    ref = _ref_bce(logits, targets)
    assert jnp.allclose(loss, ref, rtol=3e-5, atol=1e-6), (loss, ref)

    # --- check 2: bf16 logits, exercises the sharded (2 blocks) + masked path
    N2, C2, H2, W2 = 2, 4, 96, 128
    logits2 = jax.random.normal(k3, (N2, C2, H2, W2), dtype=jnp.bfloat16)
    targets2 = (jax.random.uniform(k4, (N2, C2, H2, W2)) > 0.5).astype(jnp.float32)
    loss2 = bce(logits2, targets2)
    jax.block_until_ready(loss2)
    ref2 = _ref_bce(logits2.astype(jnp.float32), targets2)
    assert jnp.allclose(loss2, ref2, rtol=3e-5, atol=1e-6), (loss2, ref2)

    print("KERNEL_OK")
</pallas_src>

<mosaic_0001>
module attributes {stable_mosaic.version = 11 : i64} {
  func.func @kernel(%arg0: i32, %arg1: i32, %arg2: memref<2x1024xf32, #tpu.memory_space<vmem>>, %arg3: memref<2x1024xf32, #tpu.memory_space<vmem>>, %arg4: memref<1x2x1024xf32, #tpu.memory_space<vmem>>) attributes {dimension_semantics = [#tpu.dimension_semantics<parallel>, #tpu.dimension_semantics<arbitrary>], iteration_bounds = array<i64: 1, 1>, scalar_prefetch = 0 : i64, scratch_operands = 0 : i64, tpu.core_type = #tpu.core_type<tc>, window_params = [{transform_indices = @transform_0, window_bounds = array<i64: 2, 1024>}, {transform_indices = @transform_1, window_bounds = array<i64: 2, 1024>}, {transform_indices = @transform_2, window_bounds = array<i64: 1, 2, 1024>}]} {
    %c0_i32 = arith.constant 0 : i32
    %0 = arith.cmpi eq, %arg1, %c0_i32 : i32
    %1 = arith.extui %0 : i1 to i32
    %c0_i32_0 = arith.constant 0 : i32
    %2 = arith.cmpi ne, %1, %c0_i32_0 : i32
    scf.if %2 {
      %cst_17 = arith.constant 0.000000e+00 : f32
      %31 = vector.broadcast %cst_17 : f32 to vector<1x2x1024xf32>
      %c0_18 = arith.constant 0 : index
      %c0_19 = arith.constant 0 : index
      %c0_20 = arith.constant 0 : index
      %32 = vector.load %arg4[%c0_18, %c0_19, %c0_20] : memref<1x2x1024xf32, #tpu.memory_space<vmem>>, vector<1x2x1024xf32>
      tpu.vector_store %arg4[%c0_18, %c0_19, %c0_20], %31 {strides = array<i32>} : memref<1x2x1024xf32, #tpu.memory_space<vmem>>, vector<1x2x1024xf32>,
    } else {
    }
    %c0 = arith.constant 0 : index
    %c0_1 = arith.constant 0 : index
    %3 = vector.load %arg2[%c0, %c0_1] : memref<2x1024xf32, #tpu.memory_space<vmem>>, vector<2x1024xf32>
    %c0_2 = arith.constant 0 : index
    %c0_3 = arith.constant 0 : index
    %4 = vector.load %arg3[%c0_2, %c0_3] : memref<2x1024xf32, #tpu.memory_space<vmem>>, vector<2x1024xf32>
    %cst = arith.constant 0.000000e+00 : f32
    %5 = vector.broadcast %cst : f32 to vector<2x1024xf32>
    %6 = arith.subf %5, %3 : vector<2x1024xf32>
    %7 = math.exp %6 : vector<2x1024xf32>
    %cst_4 = arith.constant 1.000000e+00 : f32
    %8 = vector.broadcast %cst_4 : f32 to vector<2x1024xf32>
    %9 = arith.addf %8, %7 : vector<2x1024xf32>
    %cst_5 = arith.constant 1.000000e+00 : f32
    %10 = vector.broadcast %cst_5 : f32 to vector<2x1024xf32>
    %11 = arith.divf %10, %9 : vector<2x1024xf32>
    %12 = math.log %11 : vector<2x1024xf32>
    %cst_6 = arith.constant 0.000000e+00 : f32
    %13 = vector.broadcast %cst_6 : f32 to vector<2x1024xf32>
    %14 = arith.subf %13, %12 : vector<2x1024xf32>
    %cst_7 = arith.constant 1.000000e+02 : f32
    %15 = vector.broadcast %cst_7 : f32 to vector<2x1024xf32>
    %16 = arith.minimumf %14, %15 : vector<2x1024xf32>
    %cst_8 = arith.constant 1.000000e+00 : f32
    %17 = vector.broadcast %cst_8 : f32 to vector<2x1024xf32>
    %18 = arith.subf %17, %11 : vector<2x1024xf32>
    %19 = math.log %18 : vector<2x1024xf32>
    %cst_9 = arith.constant 0.000000e+00 : f32
    %20 = vector.broadcast %cst_9 : f32 to vector<2x1024xf32>
    %21 = arith.subf %20, %19 : vector<2x1024xf32>
    %cst_10 = arith.constant 1.000000e+02 : f32
    %22 = vector.broadcast %cst_10 : f32 to vector<2x1024xf32>
    %23 = arith.minimumf %21, %22 : vector<2x1024xf32>
    %24 = arith.subf %16, %23 : vector<2x1024xf32>
    %25 = arith.mulf %4, %24 : vector<2x1024xf32>
    %26 = arith.addf %25, %23 : vector<2x1024xf32>
    %c0_11 = arith.constant 0 : index
    %c0_12 = arith.constant 0 : index
    %c0_13 = arith.constant 0 : index
    %27 = vector.load %arg4[%c0_11, %c0_12, %c0_13] : memref<1x2x1024xf32, #tpu.memory_space<vmem>>, vector<1x2x1024xf32>
    %28 = vector.shape_cast %26 : vector<2x1024xf32> to vector<1x2x1024xf32>
    %29 = arith.addf %27, %28 : vector<1x2x1024xf32>
    %c0_14 = arith.constant 0 : index
    %c0_15 = arith.constant 0 : index
    %c0_16 = arith.constant 0 : index
    %30 = vector.load %arg4[%c0_14, %c0_15, %c0_16] : memref<1x2x1024xf32, #tpu.memory_space<vmem>>, vector<1x2x1024xf32>
    tpu.vector_store %arg4[%c0_14, %c0_15, %c0_16], %29 {strides = array<i32>} : memref<1x2x1024xf32, #tpu.memory_space<vmem>>, vector<1x2x1024xf32>,
    return
  }
  func.func @transform_0(%arg0: i32, %arg1: i32) -> (i32, i32) {
    %c1_i32 = arith.constant 1 : i32
    %0 = arith.muli %arg0, %c1_i32 : i32
    %1 = arith.addi %0, %arg1 : i32
    %c0_i32 = arith.constant 0 : i32
    %c0_i32_0 = arith.constant 0 : i32
    return %1, %c0_i32 : i32, i32
  }
  func.func @transform_1(%arg0: i32, %arg1: i32) -> (i32, i32) {
    %c1_i32 = arith.constant 1 : i32
    %0 = arith.muli %arg0, %c1_i32 : i32
    %1 = arith.addi %0, %arg1 : i32
    %c0_i32 = arith.constant 0 : i32
    %c0_i32_0 = arith.constant 0 : i32
    return %1, %c0_i32 : i32, i32
  }
  func.func @transform_2(%arg0: i32, %arg1: i32) -> (i32, i32, i32) {
    %c0_i32 = arith.constant 0 : i32
    %c0_i32_0 = arith.constant 0 : i32
    %c0_i32_1 = arith.constant 0 : i32
    return %arg0, %c0_i32, %c0_i32_0 : i32, i32, i32
  }
}

</mosaic_0001>

<llo_original>
// kernel: bce_loss.1
$region0: #{bce_loss.1}
  #allocation0 [shape = 'u32[]', space=smem, size = 0x4, offset = 0x4, fixed_abs, tag = 'smem constant byte address 0x4 - core index']
  #allocation1 [shape = 'u32[144,128]{1,0:T(1,128)}', space=vmem, size = 0x12000, scoped, tag = 'internal scratch']
  %s0 = inlined_call_operand.vmem [shape: f32[2,1024], index: 0, kind: input, shape index: {}]
  %s1 = inlined_call_operand.vmem [shape: f32[2,1024], index: 1, kind: input, shape index: {}]
  %s2 = inlined_call_operand.vmem [shape: f32[1,2,1024], index: 2, kind: output, shape index: {}]
  %s3 = sld [smem:[#allocation0]]
  $region22: #{bce_loss.1} parent=0
    _
  %s5 = ssub.s32 1, %s3
  %s6 = scalar_select 0, %s5, %s3
  // Predicated region
  $region2: #{bce_loss.1} parent=0 // pred_check
    _
  $region3: #{bce_loss.1} parent=0 // pred_check_branch
    %8 = sbr.rel (0) target = $region5
  $region4: #{bce_loss.1} parent=0 // pred_region
    %s9 = sadd.s32 0, 0
    %p10 = scmp.lt.s32.totalorder %s9, 0
    %s11 = scalar_select %p10, %s9, 0
    %s12 = smul.addr %s11, 8
    %s13 = smul.addr %s12, 2
    %s14 = scalar_lea.vmem %s0, %s13
    %s15 = sadd.s32 0, 0
  $region5: #{bce_loss.1} parent=0 // pred_fallthru
    _
  // Predicated region
  $region6: #{bce_loss.1} parent=0 // pred_check
    _
  $region7: #{bce_loss.1} parent=0 // pred_check_branch
    %17 = sbr.rel (0) target = $region9
  $region8: #{bce_loss.1} parent=0 // pred_region
    %s18 = sadd.s32 0, 0
    %p19 = scmp.lt.s32.totalorder %s18, 0
    %s20 = scalar_select %p19, %s18, 0
    %s21 = smul.addr %s20, 8
    %s22 = smul.addr %s21, 2
    %s23 = scalar_lea.vmem %s1, %s22
    %s24 = sadd.s32 0, 0
  $region9: #{bce_loss.1} parent=0 // pred_fallthru
    _
  %s25 = sadd.s32 0, 0
  %p26 = scmp.lt.s32.totalorder %s25, 0
  %s27 = scalar_select %p26, %s25, 0
  %s28 = smul.addr %s27, 8
  %s29 = smul.addr %s28, 2
  %s30 = scalar_lea.vmem %s0, %s29
  %s31 = sadd.s32 0, 0
  %p32 = scmp.lt.s32.totalorder %s31, 0
  %s33 = scalar_select %p32, %s31, 0
  %s34 = smul.addr %s33, 8
  %s35 = smul.addr %s34, 2
  %s36 = scalar_lea.vmem %s1, %s35
  %s37 = sadd.s32 0, 0
  %p38 = scmp.lt.s32.totalorder %s37, 0
  %s39 = scalar_select %p38, %s37, 0
  %s40 = smul.addr %s39, 8
  %s41 = smul.addr %s40, 2
  %s42 = scalar_lea.vmem %s0, %s41
  %s43 = sadd.s32 0, 0
  %s44 = sadd.s32 0, 0
  %p45 = scmp.lt.s32.totalorder %s44, 0
  %s46 = scalar_select %p45, %s44, 0
  %s47 = smul.addr %s46, 8
  %s48 = smul.addr %s47, 2
  %s49 = scalar_lea.vmem %s1, %s48
  %s50 = sadd.s32 0, 0
  %p51 = scmp.eq.s32.totalorder 0, 0
  // Predicated region
  $region10: #{bce_loss.1} parent=0 // pred_check
    %p52 = pneg %p51
  $region11: #{bce_loss.1} parent=0 // pred_check_branch
    %54 = sbr.rel (%p52) target = $region13
  $region12: #{bce_loss.1} parent=0 // pred_region
    %55 = vst [vmem:[%s2] sm:$0xff] 0.0
    %56 = vst [vmem:[%s2 + $0x8] sm:$0xff] 0.0
  $region13: #{bce_loss.1} parent=0 // pred_fallthru
    _
  %v57 = vld [vmem:[%s42] sm:$0xff]
  %v58 = vld [vmem:[%s42 + $0x8] sm:$0xff]
  %v59 = vld [vmem:[%s49] sm:$0xff]
  %v60 = vld [vmem:[%s49 + $0x8] sm:$0xff]
  %v61 = vsub.f32 0.0, %v57
  %v62 = vsub.f32 0.0, %v58
  %v63 = vmul.f32 %v61, 1.442695
  %v64 = vpow.pop %v63
  %v65 = vmul.f32 %v62, 1.442695
  %v66 = vpow.pop %v65
  %v67 = vadd.f32 %v64, 1.0
  %v68 = vadd.f32 %v66, 1.0
  %v69 = vrcp.pop %v67
  %v70 = vmul.f32 1.0, %v69
  %v71 = vrcp.pop %v68
  %v72 = vmul.f32 1.0, %v71
  %v73 = vlog2.pop %v70
  %v74 = vmul.f32 %v73, 0.6931472
  %v75 = vlog2.pop %v72
  %v76 = vmul.f32 %v75, 0.6931472
  %v77 = vsub.f32 0.0, %v74
  %v78 = vsub.f32 0.0, %v76
  %v79 = vmin.f32 %v77, 100.0
  %v80 = vmin.f32 %v78, 100.0
  %v81 = vsub.f32 1.0, %v70
  %v82 = vsub.f32 1.0, %v72
  %v83 = vlog2.pop %v81
  %v84 = vmul.f32 %v83, 0.6931472
  %v85 = vlog2.pop %v82
  %v86 = vmul.f32 %v85, 0.6931472
  %v87 = vsub.f32 0.0, %v84
  %v88 = vsub.f32 0.0, %v86
  %v89 = vmin.f32 %v87, 100.0
  %v90 = vmin.f32 %v88, 100.0
  %v91 = vsub.f32 %v79, %v89
  %v92 = vsub.f32 %v80, %v90
  %v93 = vmul.f32 %v59, %v91
  %v94 = vmul.f32 %v60, %v92
  %v95 = vadd.f32 %v93, %v89
  %v96 = vadd.f32 %v94, %v90
  %v97 = vld [vmem:[%s2] sm:$0xff]
  %v98 = vld [vmem:[%s2 + $0x8] sm:$0xff]
  %v99 = vadd.f32 %v97, %v95
  %v100 = vadd.f32 %v98, %v96
  %101 = vst [vmem:[%s2] sm:$0xff] %v99
  %102 = vst [vmem:[%s2 + $0x8] sm:$0xff] %v100
  // Predicated region
  $region14: #{bce_loss.1} parent=0 // pred_check
    _
  $region15: #{bce_loss.1} parent=0 // pred_check_branch
    %104 = sbr.rel (0) target = $region17
  $region16: #{bce_loss.1} parent=0 // pred_region
    _
  $region17: #{bce_loss.1} parent=0 // pred_fallthru
    _
  // Predicated region
  $region18: #{bce_loss.1} parent=0 // pred_check
    _
  $region19: #{bce_loss.1} parent=0 // pred_check_branch
    %106 = sbr.rel (0) target = $region21
  $region20: #{bce_loss.1} parent=0 // pred_region
    _
  $region21: #{bce_loss.1} parent=0 // pred_fallthru
    _

</llo_original>
